<compile_context>
chip_gen: v7x
topology: tpu7x:2x2x1
jax: 0.10.0
libtpu: 0.0.40
codegen_flags: <defaults>
</compile_context>

<pallas_src>
import functools

import jax
import jax.numpy as jnp
from jax.experimental import pallas as pl
from jax.experimental.pallas import tpu as pltpu


def _round_up(n, m):
    return ((n + m - 1) // m) * m


def _mlp_fused_kernel(*refs, num_layers):
    """Whole-MLP forward on one batch tile.

    refs = (x_ref, w0, b0, w1, b1, ..., w_{L-1}, b_{L-1}, o_ref)
      x_ref: (bm, Din) bf16
      w_l:   (Din_l, Dout_l) bf16, VMEM-resident (constant index_map)
      b_l:   (1, Dout_l) f32, broadcasts over the batch tile
      o_ref: (bm, Dout_pad) bf16, lane-dense (Dout padded to a multiple of 128)
    Intermediate activations live entirely in vregs (bf16 between layers).
    """
    x_ref = refs[0]
    o_ref = refs[-1]
    wb = refs[1:-1]

    h = x_ref[...]                                   # bf16
    for l in range(num_layers):
        w = wb[2 * l][...]
        b = wb[2 * l + 1][...]
        y = jnp.dot(h, w, preferred_element_type=jnp.float32) + b   # f32 accumulate
        if l < num_layers - 1:
            # ReLU in f32 on the VPU (v5e-safe), then carry bf16 between layers.
            h = jnp.maximum(y, 0.0).astype(w.dtype)
        else:
            # Sigmoid via a single EUP tanh push: sigmoid(y) = 0.5 + 0.5*tanh(y/2).
            h = 0.5 + 0.5 * jnp.tanh(0.5 * y)
    o_ref[...] = h.astype(o_ref.dtype)


def classification_model_forward(x, params, *, bm=1024, compute_dtype=jnp.bfloat16,
                                 out_dtype=jnp.bfloat16):
    """Fused MLP forward.  x: (B, Din); params: list of (W (Din, Dout), b (Dout,))."""
    B, Din = x.shape
    num_layers = len(params)
    Dout = params[-1][0].shape[1]

    # Cast to bf16 FIRST, then pad: avoids a full-size f32 HBM copy of x in the wrapper.
    x = jnp.asarray(x).astype(compute_dtype)

    # Batch tile: multiple of 8 sublanes, capped at bm.  If the batch is big enough,
    # clamp the tile so the grid has >= 2 steps (keeps both v7x TensorCores busy).
    bm = max(8, min(bm, _round_up(B, 8)))
    if B > 8 and _round_up(B, bm) // bm < 2:
        bm = _round_up((B + 1) // 2, 8)
    B_pad = _round_up(B, bm)
    if B_pad != B:
        x = jnp.pad(x, ((0, B_pad - B), (0, 0)))

    # Lane-dense output: pad the final output features to a multiple of 128 lanes.
    # Writeback is the dominant HBM stream, so it goes out as bf16 (f32 acc in-kernel).
    dout_pad = _round_up(Dout, 128)

    flat_args = [x]
    in_specs = [pl.BlockSpec((bm, Din), lambda i: (i, 0))]
    weight_bytes = 0
    flops = 0
    for l, (w, b) in enumerate(params):
        w = jnp.asarray(w, jnp.float32)
        b = jnp.asarray(b, jnp.float32).reshape(1, -1)
        if l == num_layers - 1 and dout_pad != Dout:
            w = jnp.pad(w, ((0, 0), (0, dout_pad - Dout)))
            b = jnp.pad(b, ((0, 0), (0, dout_pad - Dout)))
        din_l, dout_l = w.shape
        flat_args += [w.astype(compute_dtype), b]          # weights bf16, bias f32
        # Constant block indices -> weights/biases stay resident across batch tiles.
        # TODO(synk): at production widths, single-buffer these constant-index specs
        #             (pipeline_mode=pl.Buffered(1)) and/or tile the largest layer.
        in_specs += [
            pl.BlockSpec((din_l, dout_l), lambda i: (0, 0)),
            pl.BlockSpec((1, dout_l), lambda i: (0, 0)),
        ]
        weight_bytes += din_l * dout_l * 2 + dout_l * 4
        flops += 2 * B_pad * din_l * dout_l

    # VMEM budget: resident weights + double-buffered x / out tiles.  Raise the scoped
    # limit above v5e's 16 MiB default; stay comfortably under v7x's 64 MiB physical.
    in_bytes = B_pad * Din * 2
    out_bytes = B_pad * dout_pad * jnp.dtype(out_dtype).itemsize
    footprint = weight_bytes + 2 * (bm * Din * 2) \
        + 2 * (bm * dout_pad * jnp.dtype(out_dtype).itemsize)
    vmem_limit = min(64 << 20, max(32 << 20, 2 * footprint + (8 << 20)))

    cost = pl.CostEstimate(
        flops=flops,
        transcendentals=B_pad * dout_pad,                   # one tanh per output elem
        bytes_accessed=in_bytes + weight_bytes + out_bytes,
    )

    kernel = functools.partial(_mlp_fused_kernel, num_layers=num_layers)
    out = pl.pallas_call(
        kernel,
        out_shape=jax.ShapeDtypeStruct((B_pad, dout_pad), out_dtype),
        grid_spec=pltpu.PrefetchScalarGridSpec(
            num_scalar_prefetch=0,
            grid=(B_pad // bm,),
            in_specs=in_specs,
            out_specs=pl.BlockSpec((bm, dout_pad), lambda i: (i, 0)),
        ),
        compiler_params=pltpu.CompilerParams(
            dimension_semantics=("parallel",),               # shards batch tiles on v7x
            vmem_limit_bytes=int(vmem_limit),
        ),
        cost_estimate=cost,
    )(*flat_args)
    # TODO(synk): this slice is an extra XLA pass over the output stream; if the
    #             consumer tolerates the padded (B_pad, 128) bf16 buffer, skip it.
    return out[:B, :Dout]


def init_params(key, in_shape, hidden_shape, out_shape):
    """Deterministic init mimicking nn.Linear's U(-1/sqrt(fan_in), 1/sqrt(fan_in))."""
    params = []
    dims = [in_shape] + list(hidden_shape) + [out_shape]
    for din, dout in zip(dims[:-1], dims[1:]):
        key, kw, kb = jax.random.split(key, 3)
        bound = 1.0 / jnp.sqrt(din)
        w = jax.random.uniform(kw, (din, dout), jnp.float32, -bound, bound)
        b = jax.random.uniform(kb, (dout,), jnp.float32, -bound, bound)
        params.append((w, b))
    return params


def reference_forward(x, params):
    """Pure-JAX f32 reference of the same forward pass."""
    h = x.astype(jnp.float32)
    for w, b in params[:-1]:
        h = jnp.maximum(h @ w + b, 0.0)
    w, b = params[-1]
    return jax.nn.sigmoid(h @ w + b)


if __name__ == "__main__":
    # Small shapes consistent with the module: in=16, hidden=[32, 24], out=3, batch=8.
    in_shape = 16
    hidden_shape = [32, 24]
    out_shape = 3
    batch = 8

    key = jax.random.PRNGKey(0)
    key, kx = jax.random.split(key)
    x = jax.random.normal(kx, (batch, in_shape), jnp.float32)

    params = init_params(key, in_shape, hidden_shape, out_shape)

    out = classification_model_forward(x, params)
    jax.block_until_ready(out)

    # Sanity: correct shape, finite, and close to the pure-JAX f32 reference
    # (tolerance accounts for bf16 MXU inputs / bf16 output stream).
    ref = reference_forward(x, params)
    assert out.shape == (batch, out_shape)
    out_f32 = out.astype(jnp.float32)
    assert bool(jnp.all(jnp.isfinite(out_f32)))
    assert bool(jnp.allclose(out_f32, ref, atol=5e-2, rtol=5e-2))

    # Second check: non-multiple-of-tile batch exercises padding and the grid>=2 path.
    key, kx2 = jax.random.split(key)
    x2 = jax.random.normal(kx2, (300, in_shape), jnp.float32)
    out2 = classification_model_forward(x2, params)
    jax.block_until_ready(out2)
    ref2 = reference_forward(x2, params)
    assert out2.shape == (300, out_shape)
    assert bool(jnp.allclose(out2.astype(jnp.float32), ref2, atol=5e-2, rtol=5e-2))

    print("KERNEL_OK")
</pallas_src>

<mosaic_0001>
module attributes {stable_mosaic.version = 11 : i64} {
  func.func @_mlp_fused_kernel(%arg0: i32, %arg1: memref<8x16xbf16, #tpu.memory_space<vmem>>, %arg2: memref<16x32xbf16, #tpu.memory_space<vmem>>, %arg3: memref<1x32xf32, #tpu.memory_space<vmem>>, %arg4: memref<32x24xbf16, #tpu.memory_space<vmem>>, %arg5: memref<1x24xf32, #tpu.memory_space<vmem>>, %arg6: memref<24x128xbf16, #tpu.memory_space<vmem>>, %arg7: memref<1x128xf32, #tpu.memory_space<vmem>>, %arg8: memref<8x128xbf16, #tpu.memory_space<vmem>>) attributes {dimension_semantics = [#tpu.dimension_semantics<parallel>], iteration_bounds = array<i64: 1>, scalar_prefetch = 0 : i64, scratch_operands = 0 : i64, tpu.core_type = #tpu.core_type<tc>, window_params = [{transform_indices = @transform_0, window_bounds = array<i64: 8, 16>}, {pipeline_mode = #tpu.pipeline_mode<synchronous>, transform_indices = @transform_1, window_bounds = array<i64: 16, 32>}, {pipeline_mode = #tpu.pipeline_mode<synchronous>, transform_indices = @transform_2, window_bounds = array<i64: 1, 32>}, {pipeline_mode = #tpu.pipeline_mode<synchronous>, transform_indices = @transform_3, window_bounds = array<i64: 32, 24>}, {pipeline_mode = #tpu.pipeline_mode<synchronous>, transform_indices = @transform_4, window_bounds = array<i64: 1, 24>}, {pipeline_mode = #tpu.pipeline_mode<synchronous>, transform_indices = @transform_5, window_bounds = array<i64: 24, 128>}, {pipeline_mode = #tpu.pipeline_mode<synchronous>, transform_indices = @transform_6, window_bounds = array<i64: 1, 128>}, {transform_indices = @transform_7, window_bounds = array<i64: 8, 128>}]} {
    %c0 = arith.constant 0 : index
    %c0_0 = arith.constant 0 : index
    %0 = vector.load %arg1[%c0, %c0_0] : memref<8x16xbf16, #tpu.memory_space<vmem>>, vector<8x16xbf16>
    %c0_1 = arith.constant 0 : index
    %c0_2 = arith.constant 0 : index
    %1 = vector.load %arg2[%c0_1, %c0_2] : memref<16x32xbf16, #tpu.memory_space<vmem>>, vector<16x32xbf16>
    %c0_3 = arith.constant 0 : index
    %c0_4 = arith.constant 0 : index
    %2 = vector.load %arg3[%c0_3, %c0_4] : memref<1x32xf32, #tpu.memory_space<vmem>>, vector<1x32xf32>
    %cst = arith.constant dense<0.000000e+00> : vector<8x32xf32>
    %3 = tpu.matmul %0, %1, %cst {dimension_numbers = #tpu.dot_dimension_numbers<[1], [0], [0], [1], [0, 0, 1, 1], [], []>} : vector<8x16xbf16>, vector<16x32xbf16>, vector<8x32xf32> -> vector<8x32xf32>
    %4 = vector.broadcast %2 : vector<1x32xf32> to vector<8x32xf32>
    %5 = arith.addf %3, %4 : vector<8x32xf32>
    %cst_5 = arith.constant 0.000000e+00 : f32
    %6 = vector.broadcast %cst_5 : f32 to vector<8x32xf32>
    %7 = arith.maximumf %5, %6 : vector<8x32xf32>
    %8 = arith.truncf %7 : vector<8x32xf32> to vector<8x32xbf16>
    %c0_6 = arith.constant 0 : index
    %c0_7 = arith.constant 0 : index
    %9 = vector.load %arg4[%c0_6, %c0_7] : memref<32x24xbf16, #tpu.memory_space<vmem>>, vector<32x24xbf16>
    %c0_8 = arith.constant 0 : index
    %c0_9 = arith.constant 0 : index
    %10 = vector.load %arg5[%c0_8, %c0_9] : memref<1x24xf32, #tpu.memory_space<vmem>>, vector<1x24xf32>
    %cst_10 = arith.constant dense<0.000000e+00> : vector<8x24xf32>
    %11 = tpu.matmul %8, %9, %cst_10 {dimension_numbers = #tpu.dot_dimension_numbers<[1], [0], [0], [1], [0, 0, 1, 1], [], []>} : vector<8x32xbf16>, vector<32x24xbf16>, vector<8x24xf32> -> vector<8x24xf32>
    %12 = vector.broadcast %10 : vector<1x24xf32> to vector<8x24xf32>
    %13 = arith.addf %11, %12 : vector<8x24xf32>
    %cst_11 = arith.constant 0.000000e+00 : f32
    %14 = vector.broadcast %cst_11 : f32 to vector<8x24xf32>
    %15 = arith.maximumf %13, %14 : vector<8x24xf32>
    %16 = arith.truncf %15 : vector<8x24xf32> to vector<8x24xbf16>
    %c0_12 = arith.constant 0 : index
    %c0_13 = arith.constant 0 : index
    %17 = vector.load %arg6[%c0_12, %c0_13] : memref<24x128xbf16, #tpu.memory_space<vmem>>, vector<24x128xbf16>
    %c0_14 = arith.constant 0 : index
    %c0_15 = arith.constant 0 : index
    %18 = vector.load %arg7[%c0_14, %c0_15] : memref<1x128xf32, #tpu.memory_space<vmem>>, vector<1x128xf32>
    %cst_16 = arith.constant dense<0.000000e+00> : vector<8x128xf32>
    %19 = tpu.matmul %16, %17, %cst_16 {dimension_numbers = #tpu.dot_dimension_numbers<[1], [0], [0], [1], [0, 0, 1, 1], [], []>} : vector<8x24xbf16>, vector<24x128xbf16>, vector<8x128xf32> -> vector<8x128xf32>
    %20 = vector.broadcast %18 : vector<1x128xf32> to vector<8x128xf32>
    %21 = arith.addf %19, %20 : vector<8x128xf32>
    %cst_17 = arith.constant 5.000000e-01 : f32
    %22 = vector.broadcast %cst_17 : f32 to vector<8x128xf32>
    %23 = arith.mulf %22, %21 : vector<8x128xf32>
    %24 = math.tanh %23 : vector<8x128xf32>
    %cst_18 = arith.constant 5.000000e-01 : f32
    %25 = vector.broadcast %cst_18 : f32 to vector<8x128xf32>
    %26 = arith.mulf %25, %24 : vector<8x128xf32>
    %cst_19 = arith.constant 5.000000e-01 : f32
    %27 = vector.broadcast %cst_19 : f32 to vector<8x128xf32>
    %28 = arith.addf %27, %26 : vector<8x128xf32>
    %29 = arith.truncf %28 : vector<8x128xf32> to vector<8x128xbf16>
    %c0_20 = arith.constant 0 : index
    %c0_21 = arith.constant 0 : index
    %30 = vector.load %arg8[%c0_20, %c0_21] : memref<8x128xbf16, #tpu.memory_space<vmem>>, vector<8x128xbf16>
    tpu.vector_store %arg8[%c0_20, %c0_21], %29 {strides = array<i32>} : memref<8x128xbf16, #tpu.memory_space<vmem>>, vector<8x128xbf16>,
    return
  }
  func.func @transform_0(%arg0: i32) -> (i32, i32) {
    %c0_i32 = arith.constant 0 : i32
    %c0_i32_0 = arith.constant 0 : i32
    return %arg0, %c0_i32 : i32, i32
  }
  func.func @transform_1(%arg0: i32) -> (i32, i32) {
    %c0_i32 = arith.constant 0 : i32
    %c0_i32_0 = arith.constant 0 : i32
    %c0_i32_1 = arith.constant 0 : i32
    return %c0_i32, %c0_i32_0 : i32, i32
  }
  func.func @transform_2(%arg0: i32) -> (i32, i32) {
    %c0_i32 = arith.constant 0 : i32
    %c0_i32_0 = arith.constant 0 : i32
    %c0_i32_1 = arith.constant 0 : i32
    return %c0_i32, %c0_i32_0 : i32, i32
  }
  func.func @transform_3(%arg0: i32) -> (i32, i32) {
    %c0_i32 = arith.constant 0 : i32
    %c0_i32_0 = arith.constant 0 : i32
    %c0_i32_1 = arith.constant 0 : i32
    return %c0_i32, %c0_i32_0 : i32, i32
  }
  func.func @transform_4(%arg0: i32) -> (i32, i32) {
    %c0_i32 = arith.constant 0 : i32
    %c0_i32_0 = arith.constant 0 : i32
    %c0_i32_1 = arith.constant 0 : i32
    return %c0_i32, %c0_i32_0 : i32, i32
  }
  func.func @transform_5(%arg0: i32) -> (i32, i32) {
    %c0_i32 = arith.constant 0 : i32
    %c0_i32_0 = arith.constant 0 : i32
    %c0_i32_1 = arith.constant 0 : i32
    return %c0_i32, %c0_i32_0 : i32, i32
  }
  func.func @transform_6(%arg0: i32) -> (i32, i32) {
    %c0_i32 = arith.constant 0 : i32
    %c0_i32_0 = arith.constant 0 : i32
    %c0_i32_1 = arith.constant 0 : i32
    return %c0_i32, %c0_i32_0 : i32, i32
  }
  func.func @transform_7(%arg0: i32) -> (i32, i32) {
    %c0_i32 = arith.constant 0 : i32
    %c0_i32_0 = arith.constant 0 : i32
    return %arg0, %c0_i32 : i32, i32
  }
}

</mosaic_0001>

<llo_original>
// kernel: tpu_custom_call.1
$region0: #{tpu_custom_call.1}
  #allocation0 [shape = 'u32[]', space=smem, size = 0x4, offset = 0x4, fixed_abs, tag = 'smem constant byte address 0x4 - core index']
  #allocation1 [shape = 'u32[144,128]{1,0:T(1,128)}', space=vmem, size = 0x12000, scoped, tag = 'internal scratch']
  %s0 = inlined_call_operand.vmem [shape: bf16[8,16], index: 0, kind: input, shape index: {}]
  %s1 = inlined_call_operand.vmem [shape: bf16[16,32], index: 1, kind: input, shape index: {}]
  %s2 = inlined_call_operand.vmem [shape: f32[1,32], index: 2, kind: input, shape index: {}]
  %s3 = inlined_call_operand.vmem [shape: bf16[32,24], index: 3, kind: input, shape index: {}]
  %s4 = inlined_call_operand.vmem [shape: f32[1,24], index: 4, kind: input, shape index: {}]
  %s5 = inlined_call_operand.vmem [shape: bf16[24,128], index: 5, kind: input, shape index: {}]
  %s6 = inlined_call_operand.vmem [shape: f32[1,128], index: 6, kind: input, shape index: {}]
  %s7 = inlined_call_operand.hbm [shape: bf16[8,128], index: 7, kind: output, shape index: {}]
  %s8 = sld [smem:[#allocation0]]
  $region38: #{tpu_custom_call.1} parent=0
    _
  %s10 = ssub.s32 1, %s8
  %s11 = scalar_select 0, %s10, %s8
  $region1: #{tpu_custom_call.1} parent=0
    #allocation2 [shape = 'u8[2048]{0}', space=vmem, size = 0x800, scoped, tag = 'output window, operand 0, single buffered']
    #allocation3 [shape = 's32[1]{0}', space=sflag, size = 0x4, scoped, tag = 'scoped memory for tpu_custom_call.1']
    %12 = vsyncpa [#allocation3], 0
    // Predicated region
    $region2: #{tpu_custom_call.1} parent=1 // pred_check
      _
    $region3: #{tpu_custom_call.1} parent=1 // pred_check_branch
      %14 = sbr.rel (0) target = $region5
    $region4: #{tpu_custom_call.1} parent=1 // pred_region
      _
    $region5: #{tpu_custom_call.1} parent=1 // pred_fallthru
      _
    // Predicated region
    $region6: #{tpu_custom_call.1} parent=1 // pred_check
      _
    $region7: #{tpu_custom_call.1} parent=1 // pred_check_branch
      %16 = sbr.rel (0) target = $region9
    $region8: #{tpu_custom_call.1} parent=1 // pred_region
      _
    $region9: #{tpu_custom_call.1} parent=1 // pred_fallthru
      _
    // Predicated region
    $region10: #{tpu_custom_call.1} parent=1 // pred_check
      _
    $region11: #{tpu_custom_call.1} parent=1 // pred_check_branch
      %18 = sbr.rel (0) target = $region13
    $region12: #{tpu_custom_call.1} parent=1 // pred_region
      _
    $region13: #{tpu_custom_call.1} parent=1 // pred_fallthru
      _
    // Predicated region
    $region14: #{tpu_custom_call.1} parent=1 // pred_check
      _
    $region15: #{tpu_custom_call.1} parent=1 // pred_check_branch
      %20 = sbr.rel (0) target = $region17
    $region16: #{tpu_custom_call.1} parent=1 // pred_region
      _
    $region17: #{tpu_custom_call.1} parent=1 // pred_fallthru
      _
    // Predicated region
    $region18: #{tpu_custom_call.1} parent=1 // pred_check
      _
    $region19: #{tpu_custom_call.1} parent=1 // pred_check_branch
      %22 = sbr.rel (0) target = $region21
    $region20: #{tpu_custom_call.1} parent=1 // pred_region
      _
    $region21: #{tpu_custom_call.1} parent=1 // pred_fallthru
      _
    // Predicated region
    $region22: #{tpu_custom_call.1} parent=1 // pred_check
      _
    $region23: #{tpu_custom_call.1} parent=1 // pred_check_branch
      %24 = sbr.rel (0) target = $region25
    $region24: #{tpu_custom_call.1} parent=1 // pred_region
      _
    $region25: #{tpu_custom_call.1} parent=1 // pred_fallthru
      _
    // Predicated region
    $region26: #{tpu_custom_call.1} parent=1 // pred_check
      _
    $region27: #{tpu_custom_call.1} parent=1 // pred_check_branch
      %26 = sbr.rel (0) target = $region29
    $region28: #{tpu_custom_call.1} parent=1 // pred_region
      _
    $region29: #{tpu_custom_call.1} parent=1 // pred_fallthru
      _
    %v28 = vld [vmem:[%s0] sm:$0xf]
    %v29 = vld [vmem:[%s1] sm:$0xf]
    %v30 = vld [vmem:[%s1 + $0x4] sm:$0xf]
    %v31 = vld [vmem:[%s2] sm:$0x1]
    %v33 = vlaneseq
    %v34 = vshrl.u32 %v33, 7
    %v35 = vsub.s32 0, %v34
    %v36 = vrot.slane %v31, %v35
    %v40 = vunpack.c.l.b16 %v29
    %v41 = vunpack.c.l.b16 %v30
    %v42 = vpack.c.b16 %v41, %v40
    %vm44 = vcmask 130048
    %v46 = vsel %vm44, %v28, 0
    %48 = vmatprep.subr.bf16.mxu0 0
    %49 = vmatpush1.bf16.msra.mxu0 %v42
    %50 = vmatprep.subr.bf16.mxu0 0
    %51 = vmatpush1.bf16.msra.mxu0 0
    %52 = vmatprep.subr.bf16.mxu0 0
    %53 = vmatpush1.bf16.msra.mxu0 0
    %54 = vmatprep.subr.bf16.mxu0 0
    %55 = vmatpush1.bf16.msra.mxu0 0
    %56 = vmatprep.subr.bf16.mxu0 0
    %57 = vmatpush1.bf16.msra.mxu0 0
    %58 = vmatprep.subr.bf16.mxu0 0
    %59 = vmatpush1.bf16.msra.mxu0 0
    %60 = vmatprep.subr.bf16.mxu0 0
    %61 = vmatpush1.bf16.msra.mxu0 0
    %62 = vmatprep.subr.bf16.mxu0 0
    %63 = vmatpush1.bf16.msra.mxu0 0
    %64 = vmatprep.subr.bf16.mxu0 0
    %65 = vmatpush1.bf16.msra.mxu0 0
    %66 = vmatprep.subr.bf16.mxu0 0
    %67 = vmatpush1.bf16.msra.mxu0 0
    %68 = vmatprep.subr.bf16.mxu0 0
    %69 = vmatpush1.bf16.msra.mxu0 0
    %70 = vmatprep.subr.bf16.mxu0 0
    %71 = vmatpush1.bf16.msra.mxu0 0
    %72 = vmatprep.subr.bf16.mxu0 0
    %73 = vmatpush1.bf16.msra.mxu0 0
    %74 = vmatprep.subr.bf16.mxu0 0
    %75 = vmatpush1.bf16.msra.mxu0 0
    %76 = vmatprep.subr.bf16.mxu0 0
    %77 = vmatpush1.bf16.msra.mxu0 0
    %78 = vmatprep.subr.bf16.mxu0 0
    %79 = vmatpush1.bf16.msra.mxu0 0
    %80 = vmatprep.mubr.bf16.mxu0 0
    %81 = vmatmul.mubr.bf16.gmra.mrb[0].mxu0 %v46
    %v82 = vpop.f32.mrb[0].mxu0
    %v83 = vadd.f32 %v36, %v82
    %v84 = vpop.f32.mrb[0].mxu0
    %v85 = vpop.f32.mrb[0].mxu0
    %v86 = vpop.f32.mrb[0].mxu0
    %87 = vdwg.mxu0
    %v88 = vmax.f32 %v83, 0.0
    %v89 = vpack.c.bf16 %v88, %v88
    %v90 = vld [vmem:[%s3] sm:$0xf]
    %v91 = vld [vmem:[%s3 + $0x4] sm:$0xf]
    %v92 = vld [vmem:[%s3 + $0x8] sm:$0xf]
    %v93 = vld [vmem:[%s3 + $0xc] sm:$0xf]
    %v94 = vld [vmem:[%s4] sm:$0x1]
    %v96 = vlaneseq
    %v97 = vshrl.u32 %v96, 7
    %v98 = vsub.s32 0, %v97
    %v99 = vrot.slane %v94, %v98
    %v105 = vunpack.c.l.b16 %v90
    %v106 = vunpack.c.l.b16 %v91
    %v107 = vunpack.c.l.b16 %v92
    %v108 = vunpack.c.l.b16 %v93
    %v109 = vpack.c.b16 %v106, %v105
    %v110 = vpack.c.b16 %v108, %v107
    %vm113 = vcmask 261120
    %v115 = vsel %vm113, %v89, 0
    %117 = vmatprep.subr.bf16.mxu0 0
    %118 = vmatpush1.bf16.msra.mxu0 %v109
    %119 = vmatprep.subr.bf16.mxu0 0
    %120 = vmatpush1.bf16.msra.mxu0 %v110
    %121 = vmatprep.subr.bf16.mxu0 0
    %122 = vmatpush1.bf16.msra.mxu0 0
    %123 = vmatprep.subr.bf16.mxu0 0
    %124 = vmatpush1.bf16.msra.mxu0 0
    %125 = vmatprep.subr.bf16.mxu0 0
    %126 = vmatpush1.bf16.msra.mxu0 0
    %127 = vmatprep.subr.bf16.mxu0 0
    %128 = vmatpush1.bf16.msra.mxu0 0
    %129 = vmatprep.subr.bf16.mxu0 0
    %130 = vmatpush1.bf16.msra.mxu0 0
    %131 = vmatprep.subr.bf16.mxu0 0
    %132 = vmatpush1.bf16.msra.mxu0 0
    %133 = vmatprep.subr.bf16.mxu0 0
    %134 = vmatpush1.bf16.msra.mxu0 0
    %135 = vmatprep.subr.bf16.mxu0 0
    %136 = vmatpush1.bf16.msra.mxu0 0
    %137 = vmatprep.subr.bf16.mxu0 0
    %138 = vmatpush1.bf16.msra.mxu0 0
    %139 = vmatprep.subr.bf16.mxu0 0
    %140 = vmatpush1.bf16.msra.mxu0 0
    %141 = vmatprep.subr.bf16.mxu0 0
    %142 = vmatpush1.bf16.msra.mxu0 0
    %143 = vmatprep.subr.bf16.mxu0 0
    %144 = vmatpush1.bf16.msra.mxu0 0
    %145 = vmatprep.subr.bf16.mxu0 0
    %146 = vmatpush1.bf16.msra.mxu0 0
    %147 = vmatprep.subr.bf16.mxu0 0
    %148 = vmatpush1.bf16.msra.mxu0 0
    %149 = vmatprep.mubr.bf16.mxu0 0
    %150 = vmatmul.mubr.bf16.gmra.mrb[0].mxu0 %v115
    %v151 = vpop.f32.mrb[0].mxu0
    %v152 = vadd.f32 %v99, %v151
    %v153 = vpop.f32.mrb[0].mxu0
    %v154 = vpop.f32.mrb[0].mxu0
    %v155 = vpop.f32.mrb[0].mxu0
    %156 = vdwg.mxu0
    %v157 = vmax.f32 %v152, 0.0
    %v158 = vpack.c.bf16 %v157, %v157
    %v159 = vld [vmem:[%s5] sm:$0xf]
    %v160 = vld [vmem:[%s5 + $0x4] sm:$0xf]
    %v161 = vld [vmem:[%s5 + $0x8] sm:$0xf]
    %v162 = vld [vmem:[%s6] sm:$0x1]
    %v164 = vlaneseq
    %v165 = vshrl.u32 %v164, 7
    %v166 = vsub.s32 0, %v165
    %v167 = vrot.slane %v162, %v166
    %v172 = vunpack.c.l.b16 %v159
    %v173 = vunpack.c.l.b16 %v160
    %v174 = vunpack.c.l.b16 %v161
    %v175 = vpack.c.b16 %v173, %v172
    %v176 = vpack.c.b16 %v174, %v174
    %vm178 = vcmask 195584
    %v180 = vsel %vm178, %v158, 0
    %vm182 = vcmask 1043456
    %v184 = vsel %vm182, %v176, 0
    %186 = vmatprep.subr.bf16.mxu0 0
    %187 = vmatpush1.bf16.msra.mxu0 %v175
    %188 = vmatprep.subr.bf16.mxu0 0
    %189 = vmatpush1.bf16.msra.mxu0 %v184
    %190 = vmatprep.subr.bf16.mxu0 0
    %191 = vmatpush1.bf16.msra.mxu0 0
    %192 = vmatprep.subr.bf16.mxu0 0
    %193 = vmatpush1.bf16.msra.mxu0 0
    %194 = vmatprep.subr.bf16.mxu0 0
    %195 = vmatpush1.bf16.msra.mxu0 0
    %196 = vmatprep.subr.bf16.mxu0 0
    %197 = vmatpush1.bf16.msra.mxu0 0
    %198 = vmatprep.subr.bf16.mxu0 0
    %199 = vmatpush1.bf16.msra.mxu0 0
    %200 = vmatprep.subr.bf16.mxu0 0
    %201 = vmatpush1.bf16.msra.mxu0 0
    %202 = vmatprep.subr.bf16.mxu0 0
    %203 = vmatpush1.bf16.msra.mxu0 0
    %204 = vmatprep.subr.bf16.mxu0 0
    %205 = vmatpush1.bf16.msra.mxu0 0
    %206 = vmatprep.subr.bf16.mxu0 0
    %207 = vmatpush1.bf16.msra.mxu0 0
    %208 = vmatprep.subr.bf16.mxu0 0
    %209 = vmatpush1.bf16.msra.mxu0 0
    %210 = vmatprep.subr.bf16.mxu0 0
    %211 = vmatpush1.bf16.msra.mxu0 0
    %212 = vmatprep.subr.bf16.mxu0 0
    %213 = vmatpush1.bf16.msra.mxu0 0
    %214 = vmatprep.subr.bf16.mxu0 0
    %215 = vmatpush1.bf16.msra.mxu0 0
    %216 = vmatprep.subr.bf16.mxu0 0
    %217 = vmatpush1.bf16.msra.mxu0 0
    %218 = vmatprep.mubr.bf16.mxu0 0
    %219 = vmatmul.mubr.bf16.gmra.mrb[0].mxu0 %v180
    %v220 = vpop.f32.mrb[0].mxu0
    %v221 = vadd.f32 %v167, %v220
    %v222 = vpop.f32.mrb[0].mxu0
    %v223 = vpop.f32.mrb[0].mxu0
    %v224 = vpop.f32.mrb[0].mxu0
    %225 = vdwg.mxu0
    %v226 = vmul.f32 %v221, 0.5
    %v227 = vtanh.pop %v226
    %v228 = vmul.f32 %v227, 0.5
    %v229 = vadd.f32 %v228, 0.5
    %v230 = vpack.c.bf16 %v229, %v229
    %231 = vst [vmem:[#allocation2] sm:$0xf] %v230
    // Predicated region
    $region30: #{tpu_custom_call.1} parent=1 // pred_check
      _
    $region31: #{tpu_custom_call.1} parent=1 // pred_check_branch
      %233 = sbr.rel (0) target = $region33
    $region32: #{tpu_custom_call.1} parent=1 // pred_region
      %s235 = ssub.s32 64, 64
      %236 = vsyncadd [#allocation3], %s235
      %s238 = sshll.u32 [#allocation2], 4
      %s239 = int_to_ptr.vmem [resolvable:$true] %s238
      %241 = dma.vmem_to_hbm [thread:$0]  %s239, 64, %s7, [#allocation3]
    $region33: #{tpu_custom_call.1} parent=1 // pred_fallthru
      _
    // Predicated region
    $region34: #{tpu_custom_call.1} parent=1 // pred_check
      _
    $region35: #{tpu_custom_call.1} parent=1 // pred_check_branch
      %243 = sbr.rel (0) target = $region37
    $region36: #{tpu_custom_call.1} parent=1 // pred_region
      %244 = dma.done [#allocation3], 64
    $region37: #{tpu_custom_call.1} parent=1 // pred_fallthru
      _
    %245 = vsyncpa [#allocation3], 1

</llo_original>
